<compile_context>
chip_gen: v5e
topology: v5e:2x2
jax: 0.10.0
libtpu: 0.0.40
codegen_flags: <defaults>
</compile_context>

<pallas_src>
import functools

import jax
import jax.numpy as jnp
from jax.experimental import pallas as pl
from jax.experimental.pallas import tpu as pltpu


def _round_up(n, m):
    return ((n + m - 1) // m) * m


_VMEM_CAP_CACHE = []


def _vmem_cap_bytes():
    """~3/4 of this chip's VMEM (per-generation), with a v7x-safe fallback."""
    if not _VMEM_CAP_CACHE:
        cap = 48 * 1024 * 1024  # safe on v7x (64 MiB physical), conservative elsewhere
        try:
            info = pltpu.get_tpu_info()
            c = int(getattr(info, "vmem_capacity_bytes", 0) or 0)
            if c > 0:
                cap = (c * 3) // 4
        except Exception:
            pass
        _VMEM_CAP_CACHE.append(int(cap))
    return _VMEM_CAP_CACHE[0]


def _dis_block_kernel(x_ref, w_ref, b_ref, o_ref, *, normalize, negative_slope, eps, true_p):
    # x_ref: (Bt, Kp, Pp) bf16 im2col patches (Kp = pad16(Cin*9), Pp = pad128(H_out*W_out))
    # w_ref: (Coutp, Kp)  bf16 reshaped conv weight (zero-padded rows/cols)
    # b_ref: (Coutp, 1)   f32 conv bias (zero-padded rows)
    # o_ref: (Bt, Coutp, Pp)
    w = w_ref[...]
    b = b_ref[...]
    bt = x_ref.shape[0]
    pp = x_ref.shape[2]

    if normalize and true_p != pp:
        lane = jax.lax.broadcasted_iota(jnp.int32, (1, pp), 1)
        lane_mask = lane < true_p            # padded lanes excluded from the norm stats
    else:
        lane_mask = None
    inv_p = 1.0 / float(true_p)

    # Static unrolled loop over the Bt batch elements of this grid step (Bt is small).
    for bi in range(bt):
        x = x_ref[bi]                                                  # (Kp, Pp) bf16
        # Conv as a single MXU matmul with f32 accumulation; P on the lane axis.
        y = jnp.dot(w, x, preferred_element_type=jnp.float32) + b      # (Coutp, Pp) f32

        if normalize:
            # InstanceNorm2d (affine=False, eps=1e-5): per-channel stats over spatial P,
            # biased variance, exact two-pass form var = mean((y - mean)^2) in f32.
            ym = y if lane_mask is None else jnp.where(lane_mask, y, 0.0)
            mean = jnp.sum(ym, axis=1, keepdims=True) * inv_p          # (Coutp, 1)
            d = y - mean
            dm = d if lane_mask is None else jnp.where(lane_mask, d, 0.0)
            var = jnp.sum(dm * dm, axis=1, keepdims=True) * inv_p
            y = d * jax.lax.rsqrt(var + eps)

        # LeakyReLU(negative_slope) as a single max (valid since slope < 1).
        y = jnp.maximum(y, negative_slope * y)
        o_ref[bi] = y.astype(o_ref.dtype)


def _im2col_s2p1_k3_kp(x):
    """x: [B, Cin, H, W] -> patches [B, Cin*9, P] with P = H_out*W_out on the last axis."""
    B, Cin, H, W = x.shape
    H_out = (H + 2 * 1 - 3) // 2 + 1
    W_out = (W + 2 * 1 - 3) // 2 + 1
    xp = jnp.pad(x, ((0, 0), (0, 0), (1, 1), (1, 1)))
    cols = []
    for kh in range(3):
        for kw in range(3):
            # output position (oh, ow) reads padded (2*oh + kh, 2*ow + kw)
            cols.append(xp[:, :, kh:kh + 2 * H_out:2, kw:kw + 2 * W_out:2])
    patches = jnp.stack(cols, axis=2)                      # [B, Cin, 9, H_out, W_out]
    patches = patches.reshape(B, Cin * 9, H_out * W_out)   # [B, K, P]; K order = (Cin, kh, kw)
    return patches, H_out, W_out


@functools.partial(jax.jit, static_argnames=("normalize", "out_dtype"))
def dis_block(x, weight, bias, normalize=True, out_dtype=jnp.float32):
    """x: [B, Cin, H, W], weight: [Cout, Cin, 3, 3], bias: [Cout] -> [B, Cout, H//2, W//2]."""
    B, Cin, H, W = x.shape
    Cout = weight.shape[0]

    patches, H_out, W_out = _im2col_s2p1_k3_kp(x)
    P = H_out * W_out
    K = Cin * 9

    # Padded extents: lane-dense P, bf16-sublane-dense K, sublane-dense Cout.
    K_pad = _round_up(K, 16)
    P_pad = _round_up(P, 128)
    Cout_pad = _round_up(Cout, 8)

    # bf16 MXU operands; all accumulation / norm / activation math stays f32 in-kernel.
    patches = patches.astype(jnp.bfloat16)
    patches = jnp.pad(patches, ((0, 0), (0, K_pad - K), (0, P_pad - P)))
    w2d = weight.reshape(Cout, K).astype(jnp.bfloat16)        # [Cout, K] (matches patch K order)
    w2d = jnp.pad(w2d, ((0, Cout_pad - Cout), (0, K_pad - K)))
    b2d = jnp.pad(bias.astype(jnp.float32), (0, Cout_pad - Cout)).reshape(Cout_pad, 1)

    # --- per-generation VMEM budgeting & batch-per-step selection -------------------
    out_bytes = jnp.dtype(out_dtype).itemsize
    vmem_cap = _vmem_cap_bytes()
    # Per batch element, double-buffered patch input + output block.
    per_elem = 2 * (K_pad * P_pad * 2 + Cout_pad * P_pad * out_bytes)
    # Grid-invariant weight/bias are single-buffered (pl.Buffered(1)).
    weight_bytes = Cout_pad * K_pad * 2 + Cout_pad * 4

    budget = max(vmem_cap // 2, 16 * 1024 * 1024)
    bt_fit = max(1, budget // max(per_elem, 1))
    # Fewer, fatter grid steps to amortize the ~0.35us/step cost, but keep >= 2 steps
    # when B >= 2 so the batch axis can still be split across TensorCores on v7x.
    bt = int(min(bt_fit, max(1, B // 2)))
    num_steps = -(-B // bt)
    B_pad = num_steps * bt
    if B_pad != B:
        patches = jnp.pad(patches, ((0, B_pad - B), (0, 0), (0, 0)))

    # f32 temporaries inside the kernel (~a few copies of the (Coutp, Pp) tile per element).
    need = per_elem * bt + weight_bytes + 4 * Cout_pad * P_pad * 4 * bt
    vmem_limit = int(min(max(2 * need, 32 * 1024 * 1024), vmem_cap))
    # ---------------------------------------------------------------------------------

    kernel = functools.partial(
        _dis_block_kernel, normalize=normalize, negative_slope=0.2, eps=1e-5, true_p=P)

    out = pl.pallas_call(
        kernel,
        out_shape=jax.ShapeDtypeStruct((B_pad, Cout_pad, P_pad), out_dtype),
        grid_spec=pltpu.PrefetchScalarGridSpec(
            num_scalar_prefetch=0,
            grid=(num_steps,),
            in_specs=[
                pl.BlockSpec((bt, K_pad, P_pad), lambda s: (s, 0, 0)),
                pl.BlockSpec((Cout_pad, K_pad), lambda s: (0, 0),
                             pipeline_mode=pl.Buffered(1)),     # grid-invariant weight
                pl.BlockSpec((Cout_pad, 1), lambda s: (0, 0),
                             pipeline_mode=pl.Buffered(1)),     # grid-invariant bias
            ],
            out_specs=pl.BlockSpec((bt, Cout_pad, P_pad), lambda s: (s, 0, 0)),
        ),
        compiler_params=pltpu.CompilerParams(
            dimension_semantics=("parallel",),
            vmem_limit_bytes=vmem_limit,
            # Let XLA fuse the im2col producer into the input DMA pipeline so the
            # 9x-expanded patch array is not materialized in HBM.
            allow_input_fusion=[True, False, False],
        ),
    )(patches, w2d, b2d)

    # Strip padding; [B, Cout, P] -> NCHW is then a pure reshape (no transpose).
    out = out[:B, :Cout, :P].reshape(B, Cout, H_out, W_out)
    return out


def _dis_block_ref(x, weight, bias, normalize=True):
    """Pure-JAX f32 reference matching the PyTorch module."""
    y = jax.lax.conv_general_dilated(
        x, weight, window_strides=(2, 2), padding=((1, 1), (1, 1)),
        dimension_numbers=("NCHW", "OIHW", "NCHW"))
    y = y + bias.reshape(1, -1, 1, 1)
    if normalize:
        mean = jnp.mean(y, axis=(2, 3), keepdims=True)
        var = jnp.mean((y - mean) ** 2, axis=(2, 3), keepdims=True)
        y = (y - mean) * jax.lax.rsqrt(var + 1e-5)
    return jnp.where(y > 0, y, 0.2 * y)


if __name__ == "__main__":
    key = jax.random.PRNGKey(0)
    k_x, k_w, k_b = jax.random.split(key, 3)

    B, Cin, H, W = 2, 4, 16, 16
    Cout = 8

    x = jax.random.normal(k_x, (B, Cin, H, W), dtype=jnp.float32)
    # deterministic synthetic parameters (shapes match nn.Conv2d(Cin, Cout, 3))
    weight = 0.1 * jax.random.normal(k_w, (Cout, Cin, 3, 3), dtype=jnp.float32)
    bias = 0.1 * jax.random.normal(k_b, (Cout,), dtype=jnp.float32)

    # Default (normalize=True) path.
    y = dis_block(x, weight, bias, normalize=True)
    jax.block_until_ready(y)
    assert y.shape == (B, Cout, H // 2, W // 2), y.shape

    # Sanity check vs. a pure-JAX f32 reference (kernel matmul runs in bf16).
    err = float(jnp.max(jnp.abs(y - _dis_block_ref(x, weight, bias, normalize=True))))
    assert err < 1e-1, f"max abs err vs reference: {err}"

    # normalize=False variant (conv + bias + LeakyReLU only).
    y_nn = dis_block(x, weight, bias, normalize=False)
    jax.block_until_ready(y_nn)
    assert y_nn.shape == (B, Cout, H // 2, W // 2), y_nn.shape
    err_nn = float(jnp.max(jnp.abs(y_nn - _dis_block_ref(x, weight, bias, normalize=False))))
    assert err_nn < 1e-1, f"max abs err (normalize=False) vs reference: {err_nn}"

    print("KERNEL_OK")
</pallas_src>

<mosaic_0001>
module attributes {stable_mosaic.version = 11 : i64} {
  func.func @_dis_block_kernel(%arg0: i32, %arg1: memref<1x48x128xbf16, #tpu.memory_space<vmem>>, %arg2: memref<8x48xbf16, #tpu.memory_space<vmem>>, %arg3: memref<8x1xf32, #tpu.memory_space<vmem>>, %arg4: memref<1x8x128xf32, #tpu.memory_space<vmem>>) attributes {dimension_semantics = [#tpu.dimension_semantics<parallel>], iteration_bounds = array<i64: 2>, scalar_prefetch = 0 : i64, scratch_operands = 0 : i64, tpu.core_type = #tpu.core_type<tc>, window_params = [{transform_indices = @transform_0, window_bounds = array<i64: 1, 48, 128>}, {pipeline_mode = #tpu.pipeline_mode<synchronous>, transform_indices = @transform_1, window_bounds = array<i64: 8, 48>}, {pipeline_mode = #tpu.pipeline_mode<synchronous>, transform_indices = @transform_2, window_bounds = array<i64: 8, 1>}, {transform_indices = @transform_3, window_bounds = array<i64: 1, 8, 128>}]} {
    %c0 = arith.constant 0 : index
    %c0_0 = arith.constant 0 : index
    %0 = vector.load %arg2[%c0, %c0_0] : memref<8x48xbf16, #tpu.memory_space<vmem>>, vector<8x48xbf16>
    %c0_1 = arith.constant 0 : index
    %c0_2 = arith.constant 0 : index
    %1 = vector.load %arg3[%c0_1, %c0_2] : memref<8x1xf32, #tpu.memory_space<vmem>>, vector<8x1xf32>
    %2 = tpu.iota {dimensions = array<i32: 1>} : vector<1x128xi32>
    %c64_i32 = arith.constant 64 : i32
    %3 = vector.broadcast %c64_i32 : i32 to vector<1x128xi32>
    %4 = arith.cmpi slt, %2, %3 : vector<1x128xi32>
    %c0_3 = arith.constant 0 : index
    %c0_4 = arith.constant 0 : index
    %c0_5 = arith.constant 0 : index
    %5 = vector.load %arg1[%c0_3, %c0_4, %c0_5] : memref<1x48x128xbf16, #tpu.memory_space<vmem>>, vector<1x48x128xbf16>
    %6 = vector.shape_cast %5 : vector<1x48x128xbf16> to vector<48x128xbf16>
    %cst = arith.constant dense<0.000000e+00> : vector<8x128xf32>
    %7 = tpu.matmul %0, %6, %cst {dimension_numbers = #tpu.dot_dimension_numbers<[1], [0], [0], [1], [0, 0, 1, 1], [], []>} : vector<8x48xbf16>, vector<48x128xbf16>, vector<8x128xf32> -> vector<8x128xf32>
    %8 = vector.broadcast %1 : vector<8x1xf32> to vector<8x128xf32>
    %9 = arith.addf %7, %8 : vector<8x128xf32>
    %cst_6 = arith.constant 0.000000e+00 : f32
    %10 = vector.shape_cast %4 : vector<1x128xi1> to vector<1x128xi1>
    %11 = vector.broadcast %10 : vector<1x128xi1> to vector<8x128xi1>
    %12 = vector.broadcast %cst_6 : f32 to vector<8x128xf32>
    %13 = arith.select %11, %9, %12 : vector<8x128xi1>, vector<8x128xf32>
    %cst_7 = arith.constant dense<0.000000e+00> : vector<8xf32>
    %14 = vector.multi_reduction <add>, %13, %cst_7 [1] : vector<8x128xf32> to vector<8xf32>
    %15 = vector.shape_cast %14 : vector<8xf32> to vector<8x1xf32>
    %cst_8 = arith.constant 1.562500e-02 : f32
    %16 = vector.broadcast %cst_8 : f32 to vector<8x1xf32>
    %17 = arith.mulf %15, %16 : vector<8x1xf32>
    %18 = vector.broadcast %17 : vector<8x1xf32> to vector<8x128xf32>
    %19 = arith.subf %9, %18 : vector<8x128xf32>
    %cst_9 = arith.constant 0.000000e+00 : f32
    %20 = vector.shape_cast %4 : vector<1x128xi1> to vector<1x128xi1>
    %21 = vector.broadcast %20 : vector<1x128xi1> to vector<8x128xi1>
    %22 = vector.broadcast %cst_9 : f32 to vector<8x128xf32>
    %23 = arith.select %21, %19, %22 : vector<8x128xi1>, vector<8x128xf32>
    %24 = arith.mulf %23, %23 : vector<8x128xf32>
    %cst_10 = arith.constant dense<0.000000e+00> : vector<8xf32>
    %25 = vector.multi_reduction <add>, %24, %cst_10 [1] : vector<8x128xf32> to vector<8xf32>
    %26 = vector.shape_cast %25 : vector<8xf32> to vector<8x1xf32>
    %cst_11 = arith.constant 1.562500e-02 : f32
    %27 = vector.broadcast %cst_11 : f32 to vector<8x1xf32>
    %28 = arith.mulf %26, %27 : vector<8x1xf32>
    %cst_12 = arith.constant 9.99999974E-6 : f32
    %29 = vector.broadcast %cst_12 : f32 to vector<8x1xf32>
    %30 = arith.addf %28, %29 : vector<8x1xf32>
    %31 = math.rsqrt %30 : vector<8x1xf32>
    %32 = vector.broadcast %31 : vector<8x1xf32> to vector<8x128xf32>
    %33 = arith.mulf %19, %32 : vector<8x128xf32>
    %cst_13 = arith.constant 2.000000e-01 : f32
    %34 = vector.broadcast %cst_13 : f32 to vector<8x128xf32>
    %35 = arith.mulf %34, %33 : vector<8x128xf32>
    %36 = arith.maximumf %33, %35 : vector<8x128xf32>
    %c0_14 = arith.constant 0 : index
    %c0_15 = arith.constant 0 : index
    %c0_16 = arith.constant 0 : index
    %37 = vector.load %arg4[%c0_14, %c0_15, %c0_16] : memref<1x8x128xf32, #tpu.memory_space<vmem>>, vector<1x8x128xf32>
    %38 = vector.shape_cast %37 : vector<1x8x128xf32> to vector<8x128xf32>
    %39 = vector.shape_cast %36 : vector<8x128xf32> to vector<1x8x128xf32>
    tpu.vector_store %arg4[%c0_14, %c0_15, %c0_16], %39 {strides = array<i32>} : memref<1x8x128xf32, #tpu.memory_space<vmem>>, vector<1x8x128xf32>,
    return
  }
  func.func @transform_0(%arg0: i32) -> (i32, i32, i32) {
    %c0_i32 = arith.constant 0 : i32
    %c0_i32_0 = arith.constant 0 : i32
    %c0_i32_1 = arith.constant 0 : i32
    return %arg0, %c0_i32, %c0_i32_0 : i32, i32, i32
  }
  func.func @transform_1(%arg0: i32) -> (i32, i32) {
    %c0_i32 = arith.constant 0 : i32
    %c0_i32_0 = arith.constant 0 : i32
    %c0_i32_1 = arith.constant 0 : i32
    return %c0_i32, %c0_i32_0 : i32, i32
  }
  func.func @transform_2(%arg0: i32) -> (i32, i32) {
    %c0_i32 = arith.constant 0 : i32
    %c0_i32_0 = arith.constant 0 : i32
    %c0_i32_1 = arith.constant 0 : i32
    return %c0_i32, %c0_i32_0 : i32, i32
  }
  func.func @transform_3(%arg0: i32) -> (i32, i32, i32) {
    %c0_i32 = arith.constant 0 : i32
    %c0_i32_0 = arith.constant 0 : i32
    %c0_i32_1 = arith.constant 0 : i32
    return %arg0, %c0_i32, %c0_i32_0 : i32, i32, i32
  }
}

</mosaic_0001>

<llo_original>
// kernel: dis_block.2
$region0: #{dis_block.2}
  #allocation0 [shape = 'u32[]', space=smem, size = 0x4, offset = 0x4, fixed_abs, tag = 'smem constant byte address 0x4 - core index']
  #allocation1 [shape = 'u32[72,128]{1,0:T(1,128)}', space=vmem, size = 0x9000, scoped, tag = 'internal scratch']
  #allocation2 [shape = 'u32[2048]{0}', space=vmem, size = 0x2000, scoped, tag = 'scoped memory for dis_block.2']
  #allocation3 [shape = 'u32[2048]{0}', space=vmem, size = 0x2000, scoped, tag = 'scoped memory for dis_block.2']
  #allocation4 [shape = 'u32[2048]{0}', space=vmem, size = 0x2000, scoped, tag = 'scoped memory for dis_block.2']
  #allocation5 [shape = 'u32[2048]{0}', space=vmem, size = 0x2000, scoped, tag = 'scoped memory for dis_block.2']
  #allocation6 [shape = 'u32[2048]{0}', space=vmem, size = 0x2000, scoped, tag = 'scoped memory for dis_block.2']
  %s0 = inlined_call_operand.vmem [shape: bf16[8,48], index: 0, kind: input, shape index: {}]
  %s1 = inlined_call_operand.vmem [shape: f32[8,1], index: 1, kind: input, shape index: {}]
  %s2 = inlined_call_operand.vmem [shape: bf16[2,36,64], index: 2, kind: input, shape index: {}]
  %s3 = inlined_call_operand.<no memory space> [shape: bf16[], index: 3, kind: input, shape index: {}]
  %s4 = inlined_call_operand.vmem [shape: f32[2,8,128], index: 4, kind: output, shape index: {}]
  %s5 = sld [smem:[#allocation0]]
  $region45: #{dis_block.2} parent=0
    _
  %s7 = ssub.s32 1, %s5
  %s8 = scalar_select 0, %s7, %s5
  %v9 = vstv %s3
  %v10 = vunpack.i.l.bf16 %v9
  %v12 = vunpack.i.h.bf16 %v9
  loop: start=0, step=1, limit=4
  $region2: #{dis_block.2} parent=0 // loop_pre_header
    _
  $region3: #{dis_block.2} parent=0 // loop_header
    %s15 = sphi 0, %s19
    %p16 = scmp.ge.s32.totalorder %s15, 4
    %s25 = sphi 0, %s27
    %s28 = sphi 0, %s25
    %s29 = sphi 0, %s28
    %s45 = sphi 0, %s29
    %s49 = sphi 0, %s49
    %s51 = sphi 0, %s49
    %s52 = sphi 0, %s51
    %s66 = sphi 0, %s52
    %s70 = sphi 0, %s70
    %s72 = sphi 0, %s70
    %s73 = sphi 0, %s72
    %s87 = sphi 0, %s73
    %s93 = sphi 0, %s95
    %s96 = sphi 0, %s93
    %s97 = sphi 0, %s96
    %s113 = sphi 0, %s97
  $region4: #{dis_block.2} parent=0 // loop_header_branch
    %18 = sbr.rel (%p16) target = $region8
  $region5: #{dis_block.2} parent=0 // loop_body
    %s20 = ssub.s32 %s15, 1
    %s21 = ssub.s32 %s15, 2
    %s22 = sadd.s32 %s15, 1
    %s23 = ssub.s32 %s15, %s22
    %p24 = scmp.eq.s32.totalorder %s23, 0
    %s26 = sadd.s32 %s25, 1
    %s27 = scalar_select %p24, %s25, %s26
    %p30 = pneg %p24
    %p31 = scmp.eq.s32.totalorder %s15, 1
    %p32 = por %p30, %p31
    %p33 = scmp.ne.s32.totalorder %s25, %s28
    %p34 = scmp.eq.s32.totalorder %s15, 0
    %p35 = por %p33, %p34
    %p36 = scmp.ne.s32.totalorder %s25, %s28
    %p37 = scmp.eq.s32.totalorder %s20, 1
    %p38 = por %p36, %p37
    %p39 = scmp.ne.s32.totalorder %s28, %s29
    %p40 = scmp.eq.s32.totalorder %s20, 0
    %p41 = por %p39, %p40
    %p42 = scmp.ne.s32.totalorder %s28, %s29
    %p43 = scmp.eq.s32.totalorder %s21, 1
    %p44 = por %p42, %p43
    %p46 = scmp.ne.s32.totalorder %s29, %s45
    %p47 = scmp.eq.s32.totalorder %s21, 0
    %p48 = por %p46, %p47
    %s50 = sadd.s32 %s49, 1
    %p53 = scmp.eq.s32.totalorder %s15, 1
    %p54 = scmp.ne.s32.totalorder %s49, %s51
    %p55 = scmp.eq.s32.totalorder %s15, 0
    %p56 = por %p54, %p55
    %p57 = scmp.ne.s32.totalorder %s49, %s51
    %p58 = scmp.eq.s32.totalorder %s20, 1
    %p59 = por %p57, %p58
    %p60 = scmp.ne.s32.totalorder %s51, %s52
    %p61 = scmp.eq.s32.totalorder %s20, 0
    %p62 = por %p60, %p61
    %p63 = scmp.ne.s32.totalorder %s51, %s52
    %p64 = scmp.eq.s32.totalorder %s21, 1
    %p65 = por %p63, %p64
    %p67 = scmp.ne.s32.totalorder %s52, %s66
    %p68 = scmp.eq.s32.totalorder %s21, 0
    %p69 = por %p67, %p68
    %s71 = sadd.s32 %s70, 1
    %p74 = scmp.eq.s32.totalorder %s15, 1
    %p75 = scmp.ne.s32.totalorder %s70, %s72
    %p76 = scmp.eq.s32.totalorder %s15, 0
    %p77 = por %p75, %p76
    %p78 = scmp.ne.s32.totalorder %s70, %s72
    %p79 = scmp.eq.s32.totalorder %s20, 1
    %p80 = por %p78, %p79
    %p81 = scmp.ne.s32.totalorder %s72, %s73
    %p82 = scmp.eq.s32.totalorder %s20, 0
    %p83 = por %p81, %p82
    %p84 = scmp.ne.s32.totalorder %s72, %s73
    %p85 = scmp.eq.s32.totalorder %s21, 1
    %p86 = por %p84, %p85
    %p88 = scmp.ne.s32.totalorder %s73, %s87
    %p89 = scmp.eq.s32.totalorder %s21, 0
    %p90 = por %p88, %p89
    %s91 = ssub.s32 %s15, %s22
    %p92 = scmp.eq.s32.totalorder %s91, 0
    %s94 = sadd.s32 %s93, 1
    %s95 = scalar_select %p92, %s93, %s94
    %p98 = pneg %p92
    %p99 = scmp.eq.s32.totalorder %s15, 1
    %p100 = por %p98, %p99
    %p101 = scmp.ne.s32.totalorder %s93, %s96
    %p102 = scmp.eq.s32.totalorder %s15, 0
    %p103 = por %p101, %p102
    %p104 = scmp.ne.s32.totalorder %s93, %s96
    %p105 = scmp.eq.s32.totalorder %s20, 1
    %p106 = por %p104, %p105
    %p107 = scmp.ne.s32.totalorder %s96, %s97
    %p108 = scmp.eq.s32.totalorder %s20, 0
    %p109 = por %p107, %p108
    %p110 = scmp.ne.s32.totalorder %s96, %s97
    %p111 = scmp.eq.s32.totalorder %s21, 1
    %p112 = por %p110, %p111
    %p114 = scmp.ne.s32.totalorder %s97, %s113
    %p115 = scmp.eq.s32.totalorder %s21, 0
    %p116 = por %p114, %p115
    %p117 = scmp.le.s32.totalorder 1, %s15
    %p118 = scmp.lt.s32.totalorder %s15, 3
    %p119 = pnand %p117, %p118
    %p120 = pneg %p119
    // Predicated region
    $region9: #{dis_block.2} parent=5 // pred_check
      _
    $region10: #{dis_block.2} parent=5 // pred_check_branch
      %122 = sbr.rel (%p119) target = $region12
    $region11: #{dis_block.2} parent=5 // pred_region
      %s123 = ssub.s32 %s15, 1
      // Predicated region
      $region13: #{dis_block.2} parent=11 // pred_check
        %p124 = pneg %p62
      $region14: #{dis_block.2} parent=11 // pred_check_branch
        %126 = sbr.rel (%p124) target = $region16
      $region15: #{dis_block.2} parent=11 // pred_region
        _
      $region16: #{dis_block.2} parent=11 // pred_fallthru
        _
      // Predicated region
      $region17: #{dis_block.2} parent=11 // pred_check
        %p127 = pneg %p83
      $region18: #{dis_block.2} parent=11 // pred_check_branch
        %129 = sbr.rel (%p127) target = $region20
      $region19: #{dis_block.2} parent=11 // pred_region
        _
      $region20: #{dis_block.2} parent=11 // pred_fallthru
        _
    $region12: #{dis_block.2} parent=5 // pred_fallthru
      _
    %p130 = scmp.lt.s32.totalorder %s15, 2
    // Predicated region
    $region21: #{dis_block.2} parent=5 // pred_check
      %p131 = pneg %p130
    $region22: #{dis_block.2} parent=5 // pred_check_branch
      %133 = sbr.rel (%p131) target = $region24
    $region23: #{dis_block.2} parent=5 // pred_region
      // Predicated region
      $region25: #{dis_block.2} parent=23 // pred_check
        %p134 = pneg %p35
      $region26: #{dis_block.2} parent=23 // pred_check_branch
        %136 = sbr.rel (%p134) target = $region28
      $region27: #{dis_block.2} parent=23 // pred_region
        %p137 = scmp.lt.s32.totalorder %s15, 1
        %s138 = scalar_select %p137, %s15, 1
        %s139 = smul.addr %s138, 5
        %s140 = smul.addr %s139, 4
        %s141 = scalar_lea.vmem %s2, %s140
      $region28: #{dis_block.2} parent=23 // pred_fallthru
        _
    $region24: #{dis_block.2} parent=5 // pred_fallthru
      _
    %p142 = scmp.le.s32.totalorder 1, %s15
    %p143 = scmp.lt.s32.totalorder %s15, 3
    %p144 = pnand %p142, %p143
    %p145 = pneg %p144
    // Predicated region
    $region29: #{dis_block.2} parent=5 // pred_check
      _
    $region30: #{dis_block.2} parent=5 // pred_check_branch
      %147 = sbr.rel (%p144) target = $region32
    $region31: #{dis_block.2} parent=5 // pred_region
      #allocation7 [shape = 'u8[12288]{0}', space=vmem, size = 0x3000, dematerialized = true, scoped, tag = 'FusionAdapter Buffer %fusion.1 = bf16[2,48,128]{2,1,0:T(8,128)(2,1)} fusion(%param_2.1, %param_3), kind=kLoop, calls=%fused_computation.2.clone, metadata={op_name="jit(dis_block)/jit(_pad)/pad" stack_frame_id=14}']
      %s148 = ssub.s32 %s15, 1
      %p149 = scmp.lt.s32.totalorder %s20, 1
      %s150 = scalar_select %p149, %s20, 1
      %s151 = smul.addr %s150, 5
      %s152 = smul.addr %s151, 4
      %s153 = scalar_lea.vmem %s2, %s152
      %p154 = pneg %p41
      %p155 = pneg %p38
      %p156 = pneg %p62
      %p157 = pneg %p59
      %p158 = pneg %p83
      %p159 = pneg %p80
      %p160 = pneg %p109
      %p161 = pneg %p106
      %p162 = scmp.lt.s32.totalorder %s20, 1
      %s163 = scalar_select %p162, %s20, 1
      %s164 = smul.addr %s163, 8
      %s165 = scalar_lea.vmem %s4, %s164
      %p166 = scmp.lt.s32.totalorder %s20, 1
      %s167 = scalar_select %p166, %s20, 1
      %s168 = smul.addr %s167, 5
      %s169 = smul.addr %s168, 4
      %s170 = scalar_lea.vmem %s2, %s169
      %p171 = scmp.lt.s32.totalorder %s20, 1
      %s172 = scalar_select %p171, %s20, 1
      %s173 = smul.addr %s172, 8
      %s174 = scalar_lea.vmem %s4, %s173
      %s176 = sor.u32 255, 127
      %s177 = sand.u32 %s176, 85
      %s178 = sshrl.u32 %s177, 1
      %s179 = sor.u32 %s177, %s178
      %s180 = sand.u32 51, %s179
      %s181 = sshrl.u32 %s180, 2
      %s182 = sor.u32 %s180, %s181
      %s183 = sand.u32 15, %s182
      %v184 = vld [vmem:[%s170] sm:%s183]
      %v185 = vunpack.c.l.bf16 %v184
      %v186 = vunpack.c.h.bf16 %v184
      %v187 = vlaneseq
      %v188 = vshrl.u32 %v187, 7
      %vm190 = vcmp.lt.s32.totalorder %v188, 36
      %v191 = vsel %vm190, %v185, %v10
      %v192 = vlaneseq
      %v193 = vand.u32 %v192, 127
      %vm195 = vcmp.lt.s32.totalorder %v193, 64
      %v196 = vsel %vm195, %v191, %v10
      %v197 = vpack.c.bf16 0.0, %v196
      %s199 = ssub.s32 16, 1
      %200 = vst [vmem:[#allocation7] sm:%s199] %v197
      %s201 = scalar_lea.vmem %s170, 4
      %s203 = sor.u32 255, 127
      %s204 = sand.u32 %s203, 85
      %s205 = sshrl.u32 %s204, 1
      %s206 = sor.u32 %s204, %s205
      %s207 = sand.u32 51, %s206
      %s208 = sshrl.u32 %s207, 2
      %s209 = sor.u32 %s207, %s208
      %s210 = sand.u32 15, %s209
      %v211 = vld [vmem:[%s201] sm:%s210]
      %v212 = vunpack.c.l.bf16 %v211
      %v213 = vunpack.c.h.bf16 %v211
      %v214 = vlaneseq
      %v215 = vshrl.u32 %v214, 7
      %v216 = vadd.s32 %v215, 8
      %vm217 = vcmp.lt.s32.totalorder %v216, 36
      %v218 = vsel %vm217, %v212, %v10
      %v219 = vlaneseq
      %v220 = vand.u32 %v219, 127
      %vm222 = vcmp.lt.s32.totalorder %v220, 64
      %v223 = vsel %vm222, %v218, %v10
      %s224 = scalar_lea.vmem [#allocation7], 4
      %v225 = vpack.c.bf16 0.0, %v223
      %s227 = ssub.s32 16, 1
      %228 = vst [vmem:[%s224] sm:%s227] %v225
      %s229 = scalar_lea.vmem %s170, 8
      %s231 = sor.u32 255, 127
      %s232 = sand.u32 %s231, 85
      %s233 = sshrl.u32 %s232, 1
      %s234 = sor.u32 %s232, %s233
      %s235 = sand.u32 51, %s234
      %s236 = sshrl.u32 %s235, 2
      %s237 = sor.u32 %s235, %s236
      %s238 = sand.u32 15, %s237
      %v239 = vld [vmem:[%s229] sm:%s238]
      %v240 = vunpack.c.l.bf16 %v239
      %v241 = vunpack.c.h.bf16 %v239
      %v242 = vlaneseq
      %v243 = vshrl.u32 %v242, 7
      %v244 = vadd.s32 %v243, 16
      %vm245 = vcmp.lt.s32.totalorder %v244, 36
      %v246 = vsel %vm245, %v240, %v10
      %v247 = vlaneseq
      %v248 = vand.u32 %v247, 127
      %vm250 = vcmp.lt.s32.totalorder %v248, 64
      %v251 = vsel %vm250, %v246, %v10
      %s252 = scalar_lea.vmem [#allocation7], 8
      %v253 = vpack.c.bf16 0.0, %v251
      %s255 = ssub.s32 16, 1
      %256 = vst [vmem:[%s252] sm:%s255] %v253
      %s257 = scalar_lea.vmem %s170, 12
      %s259 = sor.u32 255, 127
      %s260 = sand.u32 %s259, 85
      %s261 = sshrl.u32 %s260, 1
      %s262 = sor.u32 %s260, %s261
      %s263 = sand.u32 51, %s262
      %s264 = sshrl.u32 %s263, 2
      %s265 = sor.u32 %s263, %s264
      %s266 = sand.u32 15, %s265
      %v267 = vld [vmem:[%s257] sm:%s266]
      %v268 = vunpack.c.l.bf16 %v267
      %v269 = vunpack.c.h.bf16 %v267
      %v270 = vlaneseq
      %v271 = vshrl.u32 %v270, 7
      %v272 = vadd.s32 %v271, 24
      %vm273 = vcmp.lt.s32.totalorder %v272, 36
      %v274 = vsel %vm273, %v268, %v10
      %v275 = vlaneseq
      %v276 = vand.u32 %v275, 127
      %vm278 = vcmp.lt.s32.totalorder %v276, 64
      %v279 = vsel %vm278, %v274, %v10
      %s280 = scalar_lea.vmem [#allocation7], 12
      %v281 = vpack.c.bf16 0.0, %v279
      %s283 = ssub.s32 16, 1
      %284 = vst [vmem:[%s280] sm:%s283] %v281
      %s285 = scalar_lea.vmem %s170, 16
      %s287 = sor.u32 255, 127
      %s288 = sand.u32 %s287, 85
      %s289 = sshrl.u32 %s288, 1
      %s290 = sor.u32 %s288, %s289
      %s291 = sand.u32 51, %s290
      %s292 = sshrl.u32 %s291, 2
      %s293 = sor.u32 %s291, %s292
      %s294 = sand.u32 15, %s293
      %v295 = vld [vmem:[%s285] sm:%s294]
      %v296 = vunpack.c.l.bf16 %v295
      %v297 = vunpack.c.h.bf16 %v295
      %v298 = vlaneseq
      %v299 = vshrl.u32 %v298, 7
      %v300 = vadd.s32 %v299, 32
      %vm301 = vcmp.lt.s32.totalorder %v300, 36
      %v302 = vsel %vm301, %v296, %v10
      %v303 = vlaneseq
      %v304 = vand.u32 %v303, 127
      %vm306 = vcmp.lt.s32.totalorder %v304, 64
      %v307 = vsel %vm306, %v302, %v10
      %s308 = scalar_lea.vmem [#allocation7], 16
      %v309 = vpack.c.bf16 0.0, %v307
      %s311 = ssub.s32 16, 1
      %312 = vst [vmem:[%s308] sm:%s311] %v309
      %s313 = scalar_lea.vmem [#allocation7], 20
      %v314 = vpack.c.bf16 0.0, %v10
      %s316 = ssub.s32 16, 1
      %317 = vst [vmem:[%s313] sm:%s316] %v314
      %v319 = vld [vmem:[%s0] sm:$0xf]
      %v320 = vld [vmem:[%s1] sm:$0xff]
      %v321 = vlaneseq
      %v322 = vand.u32 %v321, 127
      %vm323 = vcmp.lt.s32.totalorder %v322, 64
      %v324 = vld [vmem:[#allocation7] sm:$0xf]
      %v325 = vld [vmem:[#allocation7 + $0x4] sm:$0xf]
      %v326 = vld [vmem:[#allocation7 + $0x8] sm:$0xf]
      %v327 = vld [vmem:[#allocation7 + $0xc] sm:$0xf]
      %v328 = vld [vmem:[#allocation7 + $0x10] sm:$0xf]
      %v329 = vld [vmem:[#allocation7 + $0x14] sm:$0xf]
      %331 = vset.pattern.permute.xlu0 0
      %332 = vperm.xlu0 %331, %v320
      %v333 = vpop.permute.xlu0 %332
      %v341 = vunpack.c.l.b16 %v324
      %v342 = vunpack.c.l.b16 %v325
      %v343 = vunpack.c.l.b16 %v326
      %v344 = vunpack.c.l.b16 %v327
      %v345 = vunpack.c.l.b16 %v328
      %v346 = vunpack.c.l.b16 %v329
      %v347 = vpack.c.b16 %v342, %v341
      %v348 = vpack.c.b16 %v344, %v343
      %v349 = vpack.c.b16 %v346, %v345
      %vm353 = vcmask 392192
      %v355 = vsel %vm353, %v319, 0
      %357 = vmatpush.bf16.msra.mxu0 0
      %358 = vmatpush.bf16.msra.mxu0 0
      %359 = vmatpush.bf16.msra.mxu0 0
      %360 = vmatpush.bf16.msra.mxu0 0
      %361 = vmatpush.bf16.msra.mxu0 0
      %362 = vmatpush.bf16.msra.mxu0 %v349
      %363 = vmatpush.bf16.msra.mxu0 %v348
      %364 = vmatpush.bf16.msra.mxu0 %v347
      %365 = vmatmul.bf16.gmra.mxu0 %v355
      %v366 = vpop.f32.mrf.mxu0
      %v367 = vadd.f32 %v333, %v366
      %v368 = vpop.f32.mrf.mxu0
      %369 = vdwg.mxu0
      %v370 = vsel %vm323, 1, 0
      %vm371 = vcmp.eq.s32.totalorder %v370, 1
      %v372 = vsel %vm371, %v367, 0.0
      %373 = vadd.xlane.f32.xlu0 %v372
      %v374 = vpop.xlane.xlu0 %373
      %v375 = vmul.f32 %v374, 0.015625
      %v376 = vsub.f32 %v367, %v375
      %v377 = vsel %vm371, %v376, 0.0
      %v378 = vmul.f32 %v377, %v377
      %379 = vadd.xlane.f32.xlu0 %v378
      %v380 = vpop.xlane.xlu0 %379
      %v381 = vmul.f32 %v380, 0.015625
      %v382 = vadd.f32 %v381, 1e-05
      %v383 = vrsqrt.pop %v382
      %v384 = vmul.f32 %v383, %v382
      %v385 = vmul.f32 %v384, %v383
      %v386 = vmul.f32 0.5, %v385
      %v387 = vsub.f32 1.5, %v386
      %v388 = vmul.f32 %v383, %v387
      %vm389 = vweird.f32 %v382
      %vm390 = vweird.f32 %v383
      %vm391 = vmor %vm389, %vm390
      %v392 = vsel %vm391, %v383, %v388
      %v393 = vmul.f32 %v376, %v392
      %v394 = vmul.f32 %v393, 0.2
      %v395 = vmax.f32 %v393, %v394
      %396 = vst [vmem:[%s174] sm:$0xff] %v395
      %p397 = scmp.lt.s32.totalorder %s20, 1
      %s398 = scalar_select %p397, %s20, 1
      %s399 = smul.addr %s398, 8
      %s400 = scalar_lea.vmem %s4, %s399
      // Predicated region
      $region33: #{dis_block.2} parent=31 // pred_check
        %p401 = pneg %p106
      $region34: #{dis_block.2} parent=31 // pred_check_branch
        %403 = sbr.rel (%p401) target = $region36
      $region35: #{dis_block.2} parent=31 // pred_region
        _
      $region36: #{dis_block.2} parent=31 // pred_fallthru
        _
    $region32: #{dis_block.2} parent=5 // pred_fallthru
      _
    %p404 = scmp.le.s32.totalorder 2, %s15
    // Predicated region
    $region37: #{dis_block.2} parent=5 // pred_check
      %p405 = pneg %p404
    $region38: #{dis_block.2} parent=5 // pred_check_branch
      %407 = sbr.rel (%p405) target = $region40
    $region39: #{dis_block.2} parent=5 // pred_region
      %s408 = ssub.s32 %s15, 2
      // Predicated region
      $region41: #{dis_block.2} parent=39 // pred_check
        %p409 = pneg %p112
      $region42: #{dis_block.2} parent=39 // pred_check_branch
        %411 = sbr.rel (%p409) target = $region44
      $region43: #{dis_block.2} parent=39 // pred_region
        %p412 = scmp.lt.s32.totalorder %s21, 1
        %s413 = scalar_select %p412, %s21, 1
        %s414 = smul.addr %s413, 8
        %s415 = scalar_lea.vmem %s4, %s414
      $region44: #{dis_block.2} parent=39 // pred_fallthru
        _
    $region40: #{dis_block.2} parent=5 // pred_fallthru
      _
  $region6: #{dis_block.2} parent=0 // loop_footer
    %s19 = sadd.s32 1, %s15
  $region7: #{dis_block.2} parent=0 // loop_footer_branch
    %14 = sbr.rel target = $region3
  $region8: #{dis_block.2} parent=0 // loop_exit
    _

</llo_original>
